<compile_context>
chip_gen: v7x
topology: tpu7x:2x2x1
jax: 0.10.0
libtpu: 0.0.40
codegen_flags: <defaults>
</compile_context>

<pallas_src>
import jax
import jax.numpy as jnp
from jax.experimental import pallas as pl
from jax.experimental.pallas import tpu as pltpu


def _partial_sum_kernel(x_ref, w_ref, o_ref):
    # x_ref: (bm, D), w_ref: (D, P) resident in VMEM, o_ref: (bm, P)
    o_ref[...] = jnp.dot(
        x_ref[...], w_ref[...], preferred_element_type=jnp.float32
    ).astype(o_ref.dtype)


def _round_up(n, m):
    return ((n + m - 1) // m) * m


def _choose_bm(batch, features):
    # Keep the double-buffered x tile (2 * bm * D * 4 bytes) under ~8 MiB so
    # the kernel fits v5e's 16 MiB default scoped VMEM with headroom, and is
    # comfortably inside v6e (32 MiB scoped) and v7x (64 MiB physical).
    x_budget_bytes = 8 * 1024 * 1024
    bm_cap = max(8, (x_budget_bytes // (2 * features * 4)) // 8 * 8)
    # 512 rows is past the measured ~85%-of-roofline knee for tiled mem-bound
    # kernels; bigger only burns VMEM.
    return min(512, bm_cap, _round_up(batch, 8))


def partial_sum(x, per_partition_weights, partition_length, num_partitions):
    """x: (B, num_partitions * partition_length) float32.
    per_partition_weights: (num_partitions, 1, partition_length) float32
      (the nn.Linear weights; all-ones in this module)."""
    B, D = x.shape
    P, L = num_partitions, partition_length
    assert D == P * L

    # Block-diagonal fused weight (D, P), built with a single vectorized
    # broadcast instead of P scatter ops:
    #   w[i*L + l, j] = weight_i[l] * (i == j)
    w = (
        per_partition_weights.reshape(P, L).astype(jnp.float32)[:, :, None]
        * jnp.eye(P, dtype=jnp.float32)[:, None, :]
    ).reshape(D, P)

    bm = _choose_bm(B, D)
    grid = (pl.cdiv(B, bm),)

    cost = pl.CostEstimate(
        flops=2 * B * D * P,
        transcendentals=0,
        bytes_accessed=B * D * 4 + D * P * 4 + B * P * 4,
    )

    return pl.pallas_call(
        _partial_sum_kernel,
        out_shape=jax.ShapeDtypeStruct((B, P), jnp.float32),
        grid_spec=pl.GridSpec(
            grid=grid,
            in_specs=[
                pl.BlockSpec((bm, D), lambda i: (i, 0)),   # batch tile of x
                pl.BlockSpec((D, P), lambda i: (0, 0)),    # W stays resident
            ],
            out_specs=pl.BlockSpec((bm, P), lambda i: (i, 0)),
        ),
        compiler_params=pltpu.CompilerParams(
            dimension_semantics=("parallel",),  # megacore sharding on v7x
        ),
        cost_estimate=cost,
    )(x, w)


if __name__ == "__main__":
    partition_length = 32
    num_partitions = 4
    batch = 8

    key = jax.random.PRNGKey(0)
    x = jax.random.normal(
        key, (batch, num_partitions * partition_length), dtype=jnp.float32
    )

    # Deterministic parameter init: the module copies all-ones into every summer.
    per_partition_weights = jnp.ones(
        (num_partitions, 1, partition_length), dtype=jnp.float32
    )

    out = partial_sum(x, per_partition_weights, partition_length, num_partitions)
    out = jax.block_until_ready(out)

    # Reference check (pure JAX): per-partition sums.
    ref = x.reshape(batch, num_partitions, partition_length).sum(axis=-1)
    assert out.shape == (batch, num_partitions)
    assert jnp.allclose(out, ref, atol=1e-5, rtol=1e-5)

    print("KERNEL_OK")
</pallas_src>

<mosaic_0001>
module attributes {stable_mosaic.version = 11 : i64} {
  func.func @_partial_sum_kernel(%arg0: i32, %arg1: memref<8x128xf32, #tpu.memory_space<vmem>>, %arg2: memref<128x4xf32, #tpu.memory_space<vmem>>, %arg3: memref<8x4xf32, #tpu.memory_space<vmem>>) attributes {dimension_semantics = [#tpu.dimension_semantics<parallel>], iteration_bounds = array<i64: 1>, scalar_prefetch = 0 : i64, scratch_operands = 0 : i64, tpu.core_type = #tpu.core_type<tc>, window_params = [{transform_indices = @transform_0, window_bounds = array<i64: 8, 128>}, {pipeline_mode = #tpu.pipeline_mode<synchronous>, transform_indices = @transform_1, window_bounds = array<i64: 128, 4>}, {transform_indices = @transform_2, window_bounds = array<i64: 8, 4>}]} {
    %c0 = arith.constant 0 : index
    %c0_0 = arith.constant 0 : index
    %0 = vector.load %arg1[%c0, %c0_0] : memref<8x128xf32, #tpu.memory_space<vmem>>, vector<8x128xf32>
    %c0_1 = arith.constant 0 : index
    %c0_2 = arith.constant 0 : index
    %1 = vector.load %arg2[%c0_1, %c0_2] : memref<128x4xf32, #tpu.memory_space<vmem>>, vector<128x4xf32>
    %cst = arith.constant dense<0.000000e+00> : vector<8x4xf32>
    %2 = tpu.matmul %0, %1, %cst {dimension_numbers = #tpu.dot_dimension_numbers<[1], [0], [0], [1], [0, 0, 1, 1], [], []>} : vector<8x128xf32>, vector<128x4xf32>, vector<8x4xf32> -> vector<8x4xf32>
    %c0_3 = arith.constant 0 : index
    %c0_4 = arith.constant 0 : index
    %3 = vector.load %arg3[%c0_3, %c0_4] : memref<8x4xf32, #tpu.memory_space<vmem>>, vector<8x4xf32>
    tpu.vector_store %arg3[%c0_3, %c0_4], %2 {strides = array<i32>} : memref<8x4xf32, #tpu.memory_space<vmem>>, vector<8x4xf32>,
    return
  }
  func.func @transform_0(%arg0: i32) -> (i32, i32) {
    %c0_i32 = arith.constant 0 : i32
    %c0_i32_0 = arith.constant 0 : i32
    return %arg0, %c0_i32 : i32, i32
  }
  func.func @transform_1(%arg0: i32) -> (i32, i32) {
    %c0_i32 = arith.constant 0 : i32
    %c0_i32_0 = arith.constant 0 : i32
    %c0_i32_1 = arith.constant 0 : i32
    return %c0_i32, %c0_i32_0 : i32, i32
  }
  func.func @transform_2(%arg0: i32) -> (i32, i32) {
    %c0_i32 = arith.constant 0 : i32
    %c0_i32_0 = arith.constant 0 : i32
    return %arg0, %c0_i32 : i32, i32
  }
}

</mosaic_0001>

<llo_original>
// kernel: tpu_custom_call.1
$region0: #{tpu_custom_call.1}
  #allocation0 [shape = 'u32[]', space=smem, size = 0x4, offset = 0x4, fixed_abs, tag = 'smem constant byte address 0x4 - core index']
  #allocation1 [shape = 'u32[144,128]{1,0:T(1,128)}', space=vmem, size = 0x12000, scoped, tag = 'internal scratch']
  %s0 = inlined_call_operand.vmem [shape: f32[8,128], index: 0, kind: input, shape index: {}]
  %s1 = inlined_call_operand.vmem [shape: f32[128,4], index: 1, kind: input, shape index: {}]
  %s2 = inlined_call_operand.vmem [shape: f32[8,4], index: 2, kind: output, shape index: {}]
  %s3 = sld [smem:[#allocation0]]
  $region18: #{tpu_custom_call.1} parent=0
    _
  %s5 = ssub.s32 1, %s3
  %s6 = scalar_select 0, %s5, %s3
  // Predicated region
  $region2: #{tpu_custom_call.1} parent=0 // pred_check
    _
  $region3: #{tpu_custom_call.1} parent=0 // pred_check_branch
    %8 = sbr.rel (0) target = $region5
  $region4: #{tpu_custom_call.1} parent=0 // pred_region
    _
  $region5: #{tpu_custom_call.1} parent=0 // pred_fallthru
    _
  // Predicated region
  $region6: #{tpu_custom_call.1} parent=0 // pred_check
    _
  $region7: #{tpu_custom_call.1} parent=0 // pred_check_branch
    %10 = sbr.rel (0) target = $region9
  $region8: #{tpu_custom_call.1} parent=0 // pred_region
    _
  $region9: #{tpu_custom_call.1} parent=0 // pred_fallthru
    _
  %v11 = vld [vmem:[%s0] sm:$0xff]
  %v12 = vld [vmem:[%s1] sm:$0xff]
  %v13 = vld [vmem:[%s1 + $0x8] sm:$0xff]
  %v14 = vld [vmem:[%s1 + $0x10] sm:$0xff]
  %v15 = vld [vmem:[%s1 + $0x18] sm:$0xff]
  %v16 = vld [vmem:[%s1 + $0x20] sm:$0xff]
  %v17 = vld [vmem:[%s1 + $0x28] sm:$0xff]
  %v18 = vld [vmem:[%s1 + $0x30] sm:$0xff]
  %v19 = vld [vmem:[%s1 + $0x38] sm:$0xff]
  %v20 = vld [vmem:[%s1 + $0x40] sm:$0xff]
  %v21 = vld [vmem:[%s1 + $0x48] sm:$0xff]
  %v22 = vld [vmem:[%s1 + $0x50] sm:$0xff]
  %v23 = vld [vmem:[%s1 + $0x58] sm:$0xff]
  %v24 = vld [vmem:[%s1 + $0x60] sm:$0xff]
  %v25 = vld [vmem:[%s1 + $0x68] sm:$0xff]
  %v26 = vld [vmem:[%s1 + $0x70] sm:$0xff]
  %v27 = vld [vmem:[%s1 + $0x78] sm:$0xff]
  %28 = vmatprep.subr.mxu0 0.0
  %29 = vmatpush1.msra.mxu0 %v12
  %30 = vmatprep.subr.mxu0 0.0
  %31 = vmatpush1.msra.mxu0 %v13
  %32 = vmatprep.subr.mxu0 0.0
  %33 = vmatpush1.msra.mxu0 %v14
  %34 = vmatprep.subr.mxu0 0.0
  %35 = vmatpush1.msra.mxu0 %v15
  %36 = vmatprep.subr.mxu0 0.0
  %37 = vmatpush1.msra.mxu0 %v16
  %38 = vmatprep.subr.mxu0 0.0
  %39 = vmatpush1.msra.mxu0 %v17
  %40 = vmatprep.subr.mxu0 0.0
  %41 = vmatpush1.msra.mxu0 %v18
  %42 = vmatprep.subr.mxu0 0.0
  %43 = vmatpush1.msra.mxu0 %v19
  %44 = vmatprep.subr.mxu0 0.0
  %45 = vmatpush1.msra.mxu0 %v20
  %46 = vmatprep.subr.mxu0 0.0
  %47 = vmatpush1.msra.mxu0 %v21
  %48 = vmatprep.subr.mxu0 0.0
  %49 = vmatpush1.msra.mxu0 %v22
  %50 = vmatprep.subr.mxu0 0.0
  %51 = vmatpush1.msra.mxu0 %v23
  %52 = vmatprep.subr.mxu0 0.0
  %53 = vmatpush1.msra.mxu0 %v24
  %54 = vmatprep.subr.mxu0 0.0
  %55 = vmatpush1.msra.mxu0 %v25
  %56 = vmatprep.subr.mxu0 0.0
  %57 = vmatpush1.msra.mxu0 %v26
  %58 = vmatprep.subr.mxu0 0.0
  %59 = vmatpush1.msra.mxu0 %v27
  %60 = vmatprep.subr.mxu0 0.0
  %61 = vmatpush1.msra.mxu0 0.0
  %62 = vmatprep.subr.mxu0 0.0
  %63 = vmatpush1.msra.mxu0 0.0
  %64 = vmatprep.subr.mxu0 0.0
  %65 = vmatpush1.msra.mxu0 0.0
  %66 = vmatprep.subr.mxu0 0.0
  %67 = vmatpush1.msra.mxu0 0.0
  %68 = vmatprep.subr.mxu0 0.0
  %69 = vmatpush1.msra.mxu0 0.0
  %70 = vmatprep.subr.mxu0 0.0
  %71 = vmatpush1.msra.mxu0 0.0
  %72 = vmatprep.subr.mxu0 0.0
  %73 = vmatpush1.msra.mxu0 0.0
  %74 = vmatprep.subr.mxu0 0.0
  %75 = vmatpush1.msra.mxu0 0.0
  %76 = vmatprep.subr.mxu0 0.0
  %77 = vmatpush1.msra.mxu0 0.0
  %78 = vmatprep.subr.mxu0 0.0
  %79 = vmatpush1.msra.mxu0 0.0
  %80 = vmatprep.subr.mxu0 0.0
  %81 = vmatpush1.msra.mxu0 0.0
  %82 = vmatprep.subr.mxu0 0.0
  %83 = vmatpush1.msra.mxu0 0.0
  %84 = vmatprep.subr.mxu0 0.0
  %85 = vmatpush1.msra.mxu0 0.0
  %86 = vmatprep.subr.mxu0 0.0
  %87 = vmatpush1.msra.mxu0 0.0
  %88 = vmatprep.subr.mxu0 0.0
  %89 = vmatpush1.msra.mxu0 0.0
  %90 = vmatprep.subr.mxu0 0.0
  %91 = vmatpush1.msra.mxu0 0.0
  %92 = vmatprep.mubr.f32.mxu0 0.0
  %93 = vmatmul.mubr.f32.gmra.mrb[0].mxu0 %v11
  %v94 = vpop.f32.mrb[0].mxu0
  %v95 = vadd.f32 0.0, %v94
  %v96 = vpop.f32.mrb[0].mxu0
  %97 = vdwg.mxu0
  %vm98 = vcmask 31744
  %99 = vst.msk [vmem:[%s2] sm:$0xff] %vm98, %v95
  // Predicated region
  $region10: #{tpu_custom_call.1} parent=0 // pred_check
    _
  $region11: #{tpu_custom_call.1} parent=0 // pred_check_branch
    %101 = sbr.rel (0) target = $region13
  $region12: #{tpu_custom_call.1} parent=0 // pred_region
    _
  $region13: #{tpu_custom_call.1} parent=0 // pred_fallthru
    _
  // Predicated region
  $region14: #{tpu_custom_call.1} parent=0 // pred_check
    _
  $region15: #{tpu_custom_call.1} parent=0 // pred_check_branch
    %103 = sbr.rel (0) target = $region17
  $region16: #{tpu_custom_call.1} parent=0 // pred_region
    _
  $region17: #{tpu_custom_call.1} parent=0 // pred_fallthru
    _

</llo_original>
